<compile_context>
chip_gen: v7x
topology: tpu7x:2x2x1
jax: 0.10.0
libtpu: 0.0.40
codegen_flags: <defaults>
</compile_context>

<pallas_src>
import jax
import jax.numpy as jnp
import numpy as np
from jax.experimental import pallas as pl
from jax.experimental.pallas import tpu as pltpu


# ---------------------------------------------------------------------------
# Single fused kernel: sigma-preconditioned channel mix + pooled-cond bias +
# CFG combine, for the whole batch in one invocation.
#
# Shapes inside the kernel (all f32):
#   cs_ref     (1,)        SMEM   cond_scale
#   sigma_ref  (B, 1, 1)   VMEM
#   x_ref      (B, C, HW)  VMEM   HW on the lane axis (lane-dense)
#   uncond_ref (B, S, Hd)  VMEM
#   cond_ref   (B, S, Hd)  VMEM
#   w_ref      (C, C, 1)   VMEM   w_ref[c, d, 0] = W[c, d]
#   wct_ref    (C, Hd)     VMEM   wct_ref[d, h]  = Wc[h, d]
#   bvec_ref   (C, 1)      VMEM
#   o_ref      (B, C, HW)  VMEM
# ---------------------------------------------------------------------------
def cfg_fused_kernel(cs_ref, sigma_ref, x_ref, uncond_ref, cond_ref,
                     w_ref, wct_ref, bvec_ref, o_ref):
    scale = cs_ref[0]                                            # SMEM scalar

    # --- pooled-conditioning bias, CFG-combined before projecting (VPU) ----
    ubar = jnp.mean(uncond_ref[...], axis=1, keepdims=True)      # (B, 1, Hd)
    cbar = jnp.mean(cond_ref[...], axis=1, keepdims=True)        # (B, 1, Hd)
    comb = ubar + (cbar - ubar) * scale                          # (B, 1, Hd)
    prod = comb * wct_ref[...][None, :, :]                       # (B, C, Hd)
    bias = jnp.sum(prod, axis=-1, keepdims=True) + bvec_ref[...] # (B, C, 1)

    # --- sigma preconditioning (k-diffusion c_in) ---------------------------
    sig = sigma_ref[...]                                         # (B, 1, 1)
    c_in = jax.lax.rsqrt(sig * sig + 1.0)                        # (B, 1, 1)

    # --- channel mix on the full (B, C, HW) block ---------------------------
    # out[b, d, :] = c_in[b] * sum_c W[c, d] * x[b, c, :] + bias[b, d]
    x = x_ref[...]                                               # (B, C, HW)
    C = x.shape[1]
    acc = x[:, 0:1, :] * w_ref[0:1]                              # (B, C, HW)
    for c in range(1, C):                                        # static, tiny
        acc = acc + x[:, c:c + 1, :] * w_ref[c:c + 1]

    # single full-tile, lane-dense store
    o_ref[...] = acc * c_in + bias


# ---------------------------------------------------------------------------
# Wrapper reproducing CFGDenoiser.forward (with the synthetic inner model).
# ---------------------------------------------------------------------------
def cfg_denoiser_forward(x, sigma, uncond, cond, cond_scale, params):
    w, wc, b = params["w"], params["wc"], params["b"]
    B, C, H, W = x.shape
    S, Hd = uncond.shape[1], uncond.shape[2]
    HW = H * W

    # Keep NCHW; only flatten spatial (free).  Lane dim = HW.
    x_flat = x.reshape(B, C, HW).astype(jnp.float32)

    # Keep stores unmasked: pad HW up to a multiple of 128 if needed
    # (HW = 256 here, so this branch is not taken).
    hw_pad = ((HW + 127) // 128) * 128
    if hw_pad != HW:
        x_flat = jnp.pad(x_flat, ((0, 0), (0, 0), (0, hw_pad - HW)))

    sigma_v = sigma.astype(jnp.float32).reshape(B, 1, 1)
    cs = jnp.asarray(cond_scale, dtype=jnp.float32).reshape(1)
    w_k = w.astype(jnp.float32)[:, :, None]                     # (C, C, 1)
    wct = wc.astype(jnp.float32).T                              # (C, Hd)
    bvec = b.astype(jnp.float32).reshape(C, 1)                  # (C, 1)

    out_flat = pl.pallas_call(
        cfg_fused_kernel,
        out_shape=jax.ShapeDtypeStruct((B, C, hw_pad), jnp.float32),
        in_specs=[
            pl.BlockSpec(memory_space=pltpu.MemorySpace.SMEM),  # cond_scale
            pl.BlockSpec(memory_space=pltpu.MemorySpace.VMEM),  # sigma
            pl.BlockSpec(memory_space=pltpu.MemorySpace.VMEM),  # x
            pl.BlockSpec(memory_space=pltpu.MemorySpace.VMEM),  # uncond
            pl.BlockSpec(memory_space=pltpu.MemorySpace.VMEM),  # cond
            pl.BlockSpec(memory_space=pltpu.MemorySpace.VMEM),  # w
            pl.BlockSpec(memory_space=pltpu.MemorySpace.VMEM),  # wc^T
            pl.BlockSpec(memory_space=pltpu.MemorySpace.VMEM),  # b
        ],
        out_specs=pl.BlockSpec(memory_space=pltpu.MemorySpace.VMEM),
    )(cs, sigma_v, x_flat, uncond.astype(jnp.float32),
      cond.astype(jnp.float32), w_k, wct, bvec)

    if hw_pad != HW:
        out_flat = out_flat[:, :, :HW]
    return out_flat.reshape(B, C, H, W)


# ---------------------------------------------------------------------------
# Pure-JAX reference mirroring the PyTorch module exactly (doubled batch,
# chunk, CFG combine) for a correctness check.
# ---------------------------------------------------------------------------
def ref_forward(x, sigma, uncond, cond, cond_scale, params):
    w, wc, b = params["w"], params["wc"], params["b"]
    B = x.shape[0]
    x_in = jnp.concatenate([x, x], axis=0)                    # (2B, C, H, W)
    sigma_in = jnp.concatenate([sigma, sigma], axis=0)        # (2B,)
    cond_in = jnp.concatenate([uncond, cond], axis=0)         # (2B, S, Hd)

    c_in = (1.0 / jnp.sqrt(sigma_in ** 2 + 1.0))[:, None, None, None]
    h = jnp.einsum("bchw,cd->bdhw", x_in * c_in, w)
    cbias = jnp.mean(cond_in, axis=1) @ wc + b                # (2B, C)
    den = h + cbias[:, :, None, None]

    u, c = den[:B], den[B:]                                   # .chunk(2)
    return u + (c - u) * cond_scale


if __name__ == "__main__":
    B, C, H, W = 2, 4, 16, 16          # x: NCHW
    S, Hd = 8, 32                      # cond tokens / hidden
    cond_scale = 7.5

    key = jax.random.PRNGKey(0)
    k_x, k_s, k_u, k_c, k_w, k_wc, k_b = jax.random.split(key, 7)

    x = jax.random.normal(k_x, (B, C, H, W), jnp.float32)
    sigma = jax.random.uniform(k_s, (B,), jnp.float32, 0.5, 5.0)
    uncond = jax.random.normal(k_u, (B, S, Hd), jnp.float32)
    cond = jax.random.normal(k_c, (B, S, Hd), jnp.float32)

    # Deterministic synthetic inner-model parameters.
    params = {
        "w": jax.random.normal(k_w, (C, C), jnp.float32) * 0.3,
        "wc": jax.random.normal(k_wc, (Hd, C), jnp.float32) * 0.1,
        "b": jax.random.normal(k_b, (1, C), jnp.float32) * 0.05,
    }

    out = jax.block_until_ready(
        cfg_denoiser_forward(x, sigma, uncond, cond, cond_scale, params))
    ref = jax.block_until_ready(
        ref_forward(x, sigma, uncond, cond, cond_scale, params))

    assert out.shape == (B, C, H, W)
    np.testing.assert_allclose(np.asarray(out), np.asarray(ref),
                               rtol=1e-4, atol=1e-4)
    print("KERNEL_OK")
</pallas_src>

<mosaic_0001>
module attributes {stable_mosaic.version = 11 : i64} {
  func.func @cfg_fused_kernel(%arg0: memref<1xf32, #tpu.memory_space<smem>>, %arg1: memref<2x1x1xf32, #tpu.memory_space<vmem>>, %arg2: memref<2x4x256xf32, #tpu.memory_space<vmem>>, %arg3: memref<2x8x32xf32, #tpu.memory_space<vmem>>, %arg4: memref<2x8x32xf32, #tpu.memory_space<vmem>>, %arg5: memref<4x4x1xf32, #tpu.memory_space<vmem>>, %arg6: memref<4x32xf32, #tpu.memory_space<vmem>>, %arg7: memref<4x1xf32, #tpu.memory_space<vmem>>, %arg8: memref<2x4x256xf32, #tpu.memory_space<vmem>>) attributes {dimension_semantics = [], scalar_prefetch = 0 : i64, scratch_operands = 0 : i64, tpu.core_type = #tpu.core_type<tc>} {
    %c0 = arith.constant 0 : index
    %0 = memref.load %arg0[%c0] : memref<1xf32, #tpu.memory_space<smem>>
    %c0_0 = arith.constant 0 : index
    %c0_1 = arith.constant 0 : index
    %c0_2 = arith.constant 0 : index
    %1 = vector.load %arg3[%c0_0, %c0_1, %c0_2] : memref<2x8x32xf32, #tpu.memory_space<vmem>>, vector<2x8x32xf32>
    %cst = arith.constant dense<0.000000e+00> : vector<2x32xf32>
    %2 = vector.multi_reduction <add>, %1, %cst [1] : vector<2x8x32xf32> to vector<2x32xf32>
    %3 = vector.shape_cast %2 : vector<2x32xf32> to vector<2x1x32xf32>
    %cst_3 = arith.constant 8.000000e+00 : f32
    %4 = vector.broadcast %cst_3 : f32 to vector<2x1x32xf32>
    %5 = arith.divf %3, %4 : vector<2x1x32xf32>
    %c0_4 = arith.constant 0 : index
    %c0_5 = arith.constant 0 : index
    %c0_6 = arith.constant 0 : index
    %6 = vector.load %arg4[%c0_4, %c0_5, %c0_6] : memref<2x8x32xf32, #tpu.memory_space<vmem>>, vector<2x8x32xf32>
    %cst_7 = arith.constant dense<0.000000e+00> : vector<2x32xf32>
    %7 = vector.multi_reduction <add>, %6, %cst_7 [1] : vector<2x8x32xf32> to vector<2x32xf32>
    %8 = vector.shape_cast %7 : vector<2x32xf32> to vector<2x1x32xf32>
    %cst_8 = arith.constant 8.000000e+00 : f32
    %9 = vector.broadcast %cst_8 : f32 to vector<2x1x32xf32>
    %10 = arith.divf %8, %9 : vector<2x1x32xf32>
    %11 = arith.subf %10, %5 : vector<2x1x32xf32>
    %12 = vector.broadcast %0 : f32 to vector<2x1x32xf32>
    %13 = arith.mulf %11, %12 : vector<2x1x32xf32>
    %14 = arith.addf %5, %13 : vector<2x1x32xf32>
    %c0_9 = arith.constant 0 : index
    %c0_10 = arith.constant 0 : index
    %15 = vector.load %arg6[%c0_9, %c0_10] : memref<4x32xf32, #tpu.memory_space<vmem>>, vector<4x32xf32>
    %16 = vector.shape_cast %15 : vector<4x32xf32> to vector<1x4x32xf32>
    %17 = vector.broadcast %14 : vector<2x1x32xf32> to vector<2x4x32xf32>
    %18 = vector.broadcast %16 : vector<1x4x32xf32> to vector<2x4x32xf32>
    %19 = arith.mulf %17, %18 : vector<2x4x32xf32>
    %cst_11 = arith.constant dense<0.000000e+00> : vector<2x4xf32>
    %20 = vector.multi_reduction <add>, %19, %cst_11 [2] : vector<2x4x32xf32> to vector<2x4xf32>
    %21 = vector.shape_cast %20 : vector<2x4xf32> to vector<2x4x1xf32>
    %c0_12 = arith.constant 0 : index
    %c0_13 = arith.constant 0 : index
    %22 = vector.load %arg7[%c0_12, %c0_13] : memref<4x1xf32, #tpu.memory_space<vmem>>, vector<4x1xf32>
    %23 = vector.shape_cast %22 : vector<4x1xf32> to vector<1x4x1xf32>
    %24 = vector.broadcast %23 : vector<1x4x1xf32> to vector<2x4x1xf32>
    %25 = arith.addf %21, %24 : vector<2x4x1xf32>
    %c0_14 = arith.constant 0 : index
    %c0_15 = arith.constant 0 : index
    %c0_16 = arith.constant 0 : index
    %26 = vector.load %arg1[%c0_14, %c0_15, %c0_16] : memref<2x1x1xf32, #tpu.memory_space<vmem>>, vector<2x1x1xf32>
    %27 = arith.mulf %26, %26 : vector<2x1x1xf32>
    %cst_17 = arith.constant 1.000000e+00 : f32
    %28 = vector.broadcast %cst_17 : f32 to vector<2x1x1xf32>
    %29 = arith.addf %27, %28 : vector<2x1x1xf32>
    %30 = math.rsqrt %29 : vector<2x1x1xf32>
    %c0_18 = arith.constant 0 : index
    %c0_19 = arith.constant 0 : index
    %c0_20 = arith.constant 0 : index
    %31 = vector.load %arg2[%c0_18, %c0_19, %c0_20] : memref<2x4x256xf32, #tpu.memory_space<vmem>>, vector<2x4x256xf32>
    %32 = vector.extract_strided_slice %31 {offsets = [0, 0, 0], sizes = [2, 1, 256], strides = [1, 1, 1]} : vector<2x4x256xf32> to vector<2x1x256xf32>
    %c0_21 = arith.constant 0 : index
    %c0_22 = arith.constant 0 : index
    %c0_23 = arith.constant 0 : index
    %33 = vector.load %arg5[%c0_21, %c0_22, %c0_23] : memref<4x4x1xf32, #tpu.memory_space<vmem>>, vector<1x4x1xf32>
    %34 = vector.broadcast %32 : vector<2x1x256xf32> to vector<2x4x256xf32>
    %35 = vector.broadcast %33 : vector<1x4x1xf32> to vector<2x4x256xf32>
    %36 = arith.mulf %34, %35 : vector<2x4x256xf32>
    %37 = vector.extract_strided_slice %31 {offsets = [0, 1, 0], sizes = [2, 1, 256], strides = [1, 1, 1]} : vector<2x4x256xf32> to vector<2x1x256xf32>
    %c1 = arith.constant 1 : index
    %c0_24 = arith.constant 0 : index
    %c0_25 = arith.constant 0 : index
    %38 = vector.load %arg5[%c1, %c0_24, %c0_25] : memref<4x4x1xf32, #tpu.memory_space<vmem>>, vector<1x4x1xf32>
    %39 = vector.broadcast %37 : vector<2x1x256xf32> to vector<2x4x256xf32>
    %40 = vector.broadcast %38 : vector<1x4x1xf32> to vector<2x4x256xf32>
    %41 = arith.mulf %39, %40 : vector<2x4x256xf32>
    %42 = arith.addf %36, %41 : vector<2x4x256xf32>
    %43 = vector.extract_strided_slice %31 {offsets = [0, 2, 0], sizes = [2, 1, 256], strides = [1, 1, 1]} : vector<2x4x256xf32> to vector<2x1x256xf32>
    %c2 = arith.constant 2 : index
    %c0_26 = arith.constant 0 : index
    %c0_27 = arith.constant 0 : index
    %44 = vector.load %arg5[%c2, %c0_26, %c0_27] : memref<4x4x1xf32, #tpu.memory_space<vmem>>, vector<1x4x1xf32>
    %45 = vector.broadcast %43 : vector<2x1x256xf32> to vector<2x4x256xf32>
    %46 = vector.broadcast %44 : vector<1x4x1xf32> to vector<2x4x256xf32>
    %47 = arith.mulf %45, %46 : vector<2x4x256xf32>
    %48 = arith.addf %42, %47 : vector<2x4x256xf32>
    %49 = vector.extract_strided_slice %31 {offsets = [0, 3, 0], sizes = [2, 1, 256], strides = [1, 1, 1]} : vector<2x4x256xf32> to vector<2x1x256xf32>
    %c3 = arith.constant 3 : index
    %c0_28 = arith.constant 0 : index
    %c0_29 = arith.constant 0 : index
    %50 = vector.load %arg5[%c3, %c0_28, %c0_29] : memref<4x4x1xf32, #tpu.memory_space<vmem>>, vector<1x4x1xf32>
    %51 = vector.broadcast %49 : vector<2x1x256xf32> to vector<2x4x256xf32>
    %52 = vector.broadcast %50 : vector<1x4x1xf32> to vector<2x4x256xf32>
    %53 = arith.mulf %51, %52 : vector<2x4x256xf32>
    %54 = arith.addf %48, %53 : vector<2x4x256xf32>
    %55 = vector.broadcast %30 : vector<2x1x1xf32> to vector<2x4x256xf32>
    %56 = arith.mulf %54, %55 : vector<2x4x256xf32>
    %57 = vector.broadcast %25 : vector<2x4x1xf32> to vector<2x4x256xf32>
    %58 = arith.addf %56, %57 : vector<2x4x256xf32>
    %c0_30 = arith.constant 0 : index
    %c0_31 = arith.constant 0 : index
    %c0_32 = arith.constant 0 : index
    %59 = vector.load %arg8[%c0_30, %c0_31, %c0_32] : memref<2x4x256xf32, #tpu.memory_space<vmem>>, vector<2x4x256xf32>
    tpu.vector_store %arg8[%c0_30, %c0_31, %c0_32], %58 {strides = array<i32>} : memref<2x4x256xf32, #tpu.memory_space<vmem>>, vector<2x4x256xf32>,
    return
  }
}

</mosaic_0001>

<llo_original>
// kernel: tpu_custom_call.1
$region0: #{tpu_custom_call.1}
  #allocation0 [shape = 'u32[]', space=smem, size = 0x4, offset = 0x4, fixed_abs, tag = 'smem constant byte address 0x4 - core index']
  #allocation1 [shape = 'u32[144,128]{1,0:T(1,128)}', space=vmem, size = 0x12000, scoped, tag = 'internal scratch']
  #allocation2 [shape = 'f32[1]{0:T(128)S(6)}', space=smem, size = 0x200, scoped, tag = 'scoped memory for tpu_custom_call.1']
  %s0 = inlined_call_operand.<no memory space> [shape: f32[1], index: 0, kind: input, shape index: {}]
  %s1 = inlined_call_operand.vmem [shape: f32[2,1,1], index: 1, kind: input, shape index: {}]
  %s2 = inlined_call_operand.vmem [shape: f32[2,4,256], index: 2, kind: input, shape index: {}]
  %s3 = inlined_call_operand.vmem [shape: f32[2,8,32], index: 3, kind: input, shape index: {}]
  %s4 = inlined_call_operand.hbm [shape: f32[2,8,32], index: 4, kind: input, shape index: {}]
  %s5 = inlined_call_operand.vmem [shape: f32[4,4,1], index: 5, kind: input, shape index: {}]
  %s6 = inlined_call_operand.vmem [shape: f32[4,32], index: 6, kind: input, shape index: {}]
  %s7 = inlined_call_operand.vmem [shape: f32[4,1], index: 7, kind: input, shape index: {}]
  %s8 = inlined_call_operand.hbm [shape: f32[2,4,256], index: 8, kind: output, shape index: {}]
  %s9 = sld [smem:[#allocation0]]
  $region46: #{tpu_custom_call.1} parent=0
    _
  %s11 = ssub.s32 1, %s9
  %s12 = scalar_select 0, %s11, %s9
  %13 = sst [smem:[#allocation2]] %s0
  $region1: #{tpu_custom_call.1} parent=0
    #allocation3 [shape = 'u8[8192]{0}', space=vmem, size = 0x2000, scoped, tag = 'input window, operand 4, single buffered']
    #allocation4 [shape = 's32[1]{0}', space=sflag, size = 0x4, scoped, tag = 'scoped memory for tpu_custom_call.1']
    #allocation5 [shape = 's32[1]{0}', space=sflag, size = 0x4, scoped, tag = 'scoped memory for tpu_custom_call.1']
    #allocation6 [shape = 'u8[8192]{0}', space=vmem, size = 0x2000, scoped, tag = 'output window, operand 0, single buffered']
    %14 = vsyncpa [#allocation4], 0
    %15 = vsyncpa [#allocation5], 0
    // Predicated region
    $region2: #{tpu_custom_call.1} parent=1 // pred_check
      _
    $region3: #{tpu_custom_call.1} parent=1 // pred_check_branch
      %17 = sbr.rel (0) target = $region5
    $region4: #{tpu_custom_call.1} parent=1 // pred_region
      _
    $region5: #{tpu_custom_call.1} parent=1 // pred_fallthru
      _
    // Predicated region
    $region6: #{tpu_custom_call.1} parent=1 // pred_check
      _
    $region7: #{tpu_custom_call.1} parent=1 // pred_check_branch
      %19 = sbr.rel (0) target = $region9
    $region8: #{tpu_custom_call.1} parent=1 // pred_region
      _
    $region9: #{tpu_custom_call.1} parent=1 // pred_fallthru
      _
    // Predicated region
    $region10: #{tpu_custom_call.1} parent=1 // pred_check
      _
    $region11: #{tpu_custom_call.1} parent=1 // pred_check_branch
      %21 = sbr.rel (0) target = $region13
    $region12: #{tpu_custom_call.1} parent=1 // pred_region
      _
    $region13: #{tpu_custom_call.1} parent=1 // pred_fallthru
      _
    // Predicated region
    $region14: #{tpu_custom_call.1} parent=1 // pred_check
      _
    $region15: #{tpu_custom_call.1} parent=1 // pred_check_branch
      %23 = sbr.rel (0) target = $region17
    $region16: #{tpu_custom_call.1} parent=1 // pred_region
      _
    $region17: #{tpu_custom_call.1} parent=1 // pred_fallthru
      _
    // Predicated region
    $region18: #{tpu_custom_call.1} parent=1 // pred_check
      _
    $region19: #{tpu_custom_call.1} parent=1 // pred_check_branch
      %25 = sbr.rel (0) target = $region21
    $region20: #{tpu_custom_call.1} parent=1 // pred_region
      %s27 = ssub.s32 256, 256
      %28 = vsyncadd [#allocation4], %s27
      %s29 = sshll.u32 [#allocation3], 4
      %s30 = int_to_ptr.vmem [resolvable:$true] %s29
      %35 = dma.hbm_to_vmem [thread:$0]  %s4, 256, %s30, [#allocation4], 128, 128, 8
    $region21: #{tpu_custom_call.1} parent=1 // pred_fallthru
      _
    // Predicated region
    $region22: #{tpu_custom_call.1} parent=1 // pred_check
      _
    $region23: #{tpu_custom_call.1} parent=1 // pred_check_branch
      %37 = sbr.rel (0) target = $region25
    $region24: #{tpu_custom_call.1} parent=1 // pred_region
      _
    $region25: #{tpu_custom_call.1} parent=1 // pred_fallthru
      _
    // Predicated region
    $region26: #{tpu_custom_call.1} parent=1 // pred_check
      _
    $region27: #{tpu_custom_call.1} parent=1 // pred_check_branch
      %39 = sbr.rel (0) target = $region29
    $region28: #{tpu_custom_call.1} parent=1 // pred_region
      _
    $region29: #{tpu_custom_call.1} parent=1 // pred_fallthru
      _
    // Predicated region
    $region30: #{tpu_custom_call.1} parent=1 // pred_check
      _
    $region31: #{tpu_custom_call.1} parent=1 // pred_check_branch
      %41 = sbr.rel (0) target = $region33
    $region32: #{tpu_custom_call.1} parent=1 // pred_region
      _
    $region33: #{tpu_custom_call.1} parent=1 // pred_fallthru
      _
    // Predicated region
    $region34: #{tpu_custom_call.1} parent=1 // pred_check
      _
    $region35: #{tpu_custom_call.1} parent=1 // pred_check_branch
      %43 = sbr.rel (0) target = $region37
    $region36: #{tpu_custom_call.1} parent=1 // pred_region
      %44 = dma.done [#allocation4], 256
    $region37: #{tpu_custom_call.1} parent=1 // pred_fallthru
      _
    %s45 = sld [smem:[#allocation2]]
    %v46 = vld [vmem:[%s3] sm:$0xff]
    %v47 = vld [vmem:[%s3 + $0x8] sm:$0xff]
    %vm48 = vcmask 261120
    %v49 = vsel %vm48, %v46, 0.0
    %v50 = vrot.slane %v49, 4
    %v51 = vadd.f32 %v49, %v50
    %v52 = vrot.slane %v51, 2
    %v53 = vadd.f32 %v51, %v52
    %v54 = vrot.slane %v53, 1
    %v55 = vadd.f32 %v53, %v54
    %v56 = vsel %vm48, %v47, 0.0
    %v57 = vrot.slane %v56, 4
    %v58 = vadd.f32 %v56, %v57
    %v59 = vrot.slane %v58, 2
    %v60 = vadd.f32 %v58, %v59
    %v61 = vrot.slane %v60, 1
    %v62 = vadd.f32 %v60, %v61
    %v63 = vrcp.pop 8.0
    %v64 = vmul.f32 %v55, %v63
    %v65 = vmul.f32 %v62, %v63
    %v66 = vld [vmem:[#allocation3] sm:$0xff]
    %v67 = vld [vmem:[#allocation3 + $0x8] sm:$0xff]
    %v68 = vsel %vm48, %v66, 0.0
    %v69 = vrot.slane %v68, 4
    %v70 = vadd.f32 %v68, %v69
    %v71 = vrot.slane %v70, 2
    %v72 = vadd.f32 %v70, %v71
    %v73 = vrot.slane %v72, 1
    %v74 = vadd.f32 %v72, %v73
    %v75 = vsel %vm48, %v67, 0.0
    %v76 = vrot.slane %v75, 4
    %v77 = vadd.f32 %v75, %v76
    %v78 = vrot.slane %v77, 2
    %v79 = vadd.f32 %v77, %v78
    %v80 = vrot.slane %v79, 1
    %v81 = vadd.f32 %v79, %v80
    %v82 = vmul.f32 %v74, %v63
    %v83 = vmul.f32 %v81, %v63
    %v84 = vsub.f32 %v82, %v64
    %v85 = vsub.f32 %v83, %v65
    %v86 = vstv %s45
    %v87 = vmul.f32 %v84, %v86
    %v88 = vmul.f32 %v85, %v86
    %v89 = vadd.f32 %v64, %v87
    %v90 = vadd.f32 %v65, %v88
    %v91 = vld [vmem:[%s6] sm:$0xf]
    %v92 = vmul.f32 %v89, %v91
    %v93 = vmul.f32 %v90, %v91
    %vm94 = vcmask 257024
    %v95 = vsel %vm94, %v92, 0.0
    %96 = vadd.xlane.f32.xlu0 %v95
    %v97 = vpop.xlane.xlu0 %96
    %v98 = vsel %vm94, %v93, 0.0
    %99 = vadd.xlane.f32.xlu0 %v98
    %v100 = vpop.xlane.xlu0 %99
    %v101 = vld [vmem:[%s7] sm:$0xf]
    %v102 = vadd.f32 %v97, %v101
    %v103 = vadd.f32 %v100, %v101
    %v104 = vld [vmem:[%s1] sm:$0x1]
    %v105 = vld [vmem:[%s1 + $0x1] sm:$0x1]
    %v106 = vmul.f32 %v104, %v104
    %v107 = vmul.f32 %v105, %v105
    %v108 = vadd.f32 %v106, 1.0
    %v109 = vadd.f32 %v107, 1.0
    %v110 = vrsqrt.pop %v108
    %v111 = vrsqrt.pop %v109
    %v112 = vld [vmem:[%s2] sm:$0xff]
    %v113 = vld [vmem:[%s2 + $0x8] sm:$0xff]
    %v114 = vld [vmem:[%s5] sm:$0xf]
    %v117 = vlaneseq
    %v118 = vshrl.u32 %v117, 7
    %v119 = vsub.s32 0, %v118
    %v120 = vrot.slane %v112, %v119
    %v121 = vlaneseq
    %v122 = vshrl.u32 %v121, 7
    %v123 = vsub.s32 4, %v122
    %v124 = vrot.slane %v112, %v123
    %v125 = vlaneseq
    %v126 = vshrl.u32 %v125, 7
    %v127 = vsub.s32 0, %v126
    %v128 = vrot.slane %v113, %v127
    %v129 = vlaneseq
    %v130 = vshrl.u32 %v129, 7
    %v131 = vsub.s32 4, %v130
    %v132 = vrot.slane %v113, %v131
    %v137 = vlaneseq
    %v138 = vshrl.u32 %v137, 7
    %v139 = vsub.s32 0, %v138
    %v140 = vrot.slane %v120, %v139
    %v141 = vlaneseq
    %v142 = vshrl.u32 %v141, 7
    %v143 = vsub.s32 0, %v142
    %v144 = vrot.slane %v124, %v143
    %v145 = vlaneseq
    %v146 = vshrl.u32 %v145, 7
    %v147 = vsub.s32 0, %v146
    %v148 = vrot.slane %v128, %v147
    %v149 = vlaneseq
    %v150 = vshrl.u32 %v149, 7
    %v151 = vsub.s32 0, %v150
    %v152 = vrot.slane %v132, %v151
    %154 = vset.pattern.permute.xlu0 0
    %155 = vperm.xlu0 %154, %v114
    %v156 = vpop.permute.xlu0 %155
    %v158 = vmul.f32 %v140, %v156
    %v159 = vmul.f32 %v144, %v156
    %v160 = vmul.f32 %v148, %v156
    %v161 = vmul.f32 %v152, %v156
    %s162 = scalar_lea.vmem %s5, 4
    %v163 = vld [vmem:[%s162] sm:$0xf]
    %v164 = vlaneseq
    %v165 = vshrl.u32 %v164, 7
    %v166 = vsub.s32 1, %v165
    %v167 = vrot.slane %v112, %v166
    %v168 = vlaneseq
    %v169 = vshrl.u32 %v168, 7
    %v170 = vsub.s32 5, %v169
    %v171 = vrot.slane %v112, %v170
    %v172 = vlaneseq
    %v173 = vshrl.u32 %v172, 7
    %v174 = vsub.s32 1, %v173
    %v175 = vrot.slane %v113, %v174
    %v176 = vlaneseq
    %v177 = vshrl.u32 %v176, 7
    %v178 = vsub.s32 5, %v177
    %v179 = vrot.slane %v113, %v178
    %v184 = vlaneseq
    %v185 = vshrl.u32 %v184, 7
    %v186 = vsub.s32 1, %v185
    %v187 = vrot.slane %v167, %v186
    %v188 = vlaneseq
    %v189 = vshrl.u32 %v188, 7
    %v190 = vsub.s32 1, %v189
    %v191 = vrot.slane %v171, %v190
    %v192 = vlaneseq
    %v193 = vshrl.u32 %v192, 7
    %v194 = vsub.s32 1, %v193
    %v195 = vrot.slane %v175, %v194
    %v196 = vlaneseq
    %v197 = vshrl.u32 %v196, 7
    %v198 = vsub.s32 1, %v197
    %v199 = vrot.slane %v179, %v198
    %201 = vset.pattern.permute.xlu0 0
    %202 = vperm.xlu0 %201, %v163
    %v203 = vpop.permute.xlu0 %202
    %v205 = vmul.f32 %v187, %v203
    %v206 = vmul.f32 %v191, %v203
    %v207 = vmul.f32 %v195, %v203
    %v208 = vmul.f32 %v199, %v203
    %v209 = vadd.f32 %v158, %v205
    %v210 = vadd.f32 %v159, %v206
    %v211 = vadd.f32 %v160, %v207
    %v212 = vadd.f32 %v161, %v208
    %s213 = scalar_lea.vmem %s5, 8
    %v214 = vld [vmem:[%s213] sm:$0xf]
    %v215 = vlaneseq
    %v216 = vshrl.u32 %v215, 7
    %v217 = vsub.s32 2, %v216
    %v218 = vrot.slane %v112, %v217
    %v219 = vlaneseq
    %v220 = vshrl.u32 %v219, 7
    %v221 = vsub.s32 6, %v220
    %v222 = vrot.slane %v112, %v221
    %v223 = vlaneseq
    %v224 = vshrl.u32 %v223, 7
    %v225 = vsub.s32 2, %v224
    %v226 = vrot.slane %v113, %v225
    %v227 = vlaneseq
    %v228 = vshrl.u32 %v227, 7
    %v229 = vsub.s32 6, %v228
    %v230 = vrot.slane %v113, %v229
    %v235 = vlaneseq
    %v236 = vshrl.u32 %v235, 7
    %v237 = vsub.s32 2, %v236
    %v238 = vrot.slane %v218, %v237
    %v239 = vlaneseq
    %v240 = vshrl.u32 %v239, 7
    %v241 = vsub.s32 2, %v240
    %v242 = vrot.slane %v222, %v241
    %v243 = vlaneseq
    %v244 = vshrl.u32 %v243, 7
    %v245 = vsub.s32 2, %v244
    %v246 = vrot.slane %v226, %v245
    %v247 = vlaneseq
    %v248 = vshrl.u32 %v247, 7
    %v249 = vsub.s32 2, %v248
    %v250 = vrot.slane %v230, %v249
    %252 = vset.pattern.permute.xlu0 0
    %253 = vperm.xlu0 %252, %v214
    %v254 = vpop.permute.xlu0 %253
    %v256 = vmul.f32 %v238, %v254
    %v257 = vmul.f32 %v242, %v254
    %v258 = vmul.f32 %v246, %v254
    %v259 = vmul.f32 %v250, %v254
    %v260 = vadd.f32 %v209, %v256
    %v261 = vadd.f32 %v210, %v257
    %v262 = vadd.f32 %v211, %v258
    %v263 = vadd.f32 %v212, %v259
    %s264 = scalar_lea.vmem %s5, 12
    %v265 = vld [vmem:[%s264] sm:$0xf]
    %v266 = vlaneseq
    %v267 = vshrl.u32 %v266, 7
    %v268 = vsub.s32 3, %v267
    %v269 = vrot.slane %v112, %v268
    %v270 = vlaneseq
    %v271 = vshrl.u32 %v270, 7
    %v272 = vsub.s32 7, %v271
    %v273 = vrot.slane %v112, %v272
    %v274 = vlaneseq
    %v275 = vshrl.u32 %v274, 7
    %v276 = vsub.s32 3, %v275
    %v277 = vrot.slane %v113, %v276
    %v278 = vlaneseq
    %v279 = vshrl.u32 %v278, 7
    %v280 = vsub.s32 7, %v279
    %v281 = vrot.slane %v113, %v280
    %v286 = vlaneseq
    %v287 = vshrl.u32 %v286, 7
    %v288 = vsub.s32 3, %v287
    %v289 = vrot.slane %v269, %v288
    %v290 = vlaneseq
    %v291 = vshrl.u32 %v290, 7
    %v292 = vsub.s32 3, %v291
    %v293 = vrot.slane %v273, %v292
    %v294 = vlaneseq
    %v295 = vshrl.u32 %v294, 7
    %v296 = vsub.s32 3, %v295
    %v297 = vrot.slane %v277, %v296
    %v298 = vlaneseq
    %v299 = vshrl.u32 %v298, 7
    %v300 = vsub.s32 3, %v299
    %v301 = vrot.slane %v281, %v300
    %303 = vset.pattern.permute.xlu0 0
    %304 = vperm.xlu0 %303, %v265
    %v305 = vpop.permute.xlu0 %304
    %v307 = vmul.f32 %v289, %v305
    %v308 = vmul.f32 %v293, %v305
    %v309 = vmul.f32 %v297, %v305
    %v310 = vmul.f32 %v301, %v305
    %v311 = vadd.f32 %v260, %v307
    %v312 = vadd.f32 %v261, %v308
    %v313 = vadd.f32 %v262, %v309
    %v314 = vadd.f32 %v263, %v310
    %v317 = vlaneseq
    %v318 = vshrl.u32 %v317, 7
    %v319 = vsub.s32 0, %v318
    %v320 = vrot.slane %v110, %v319
    %v321 = vlaneseq
    %v322 = vshrl.u32 %v321, 7
    %v323 = vsub.s32 0, %v322
    %v324 = vrot.slane %v111, %v323
    %325 = vset.pattern.permute.xlu0 0
    %326 = vperm.xlu0 %325, %v320
    %v327 = vpop.permute.xlu0 %326
    %329 = vset.pattern.permute.xlu0 0
    %330 = vperm.xlu0 %329, %v324
    %v331 = vpop.permute.xlu0 %330
    %v333 = vmul.f32 %v311, %v327
    %v334 = vmul.f32 %v312, %v327
    %v335 = vmul.f32 %v313, %v331
    %v336 = vmul.f32 %v314, %v331
    %338 = vset.pattern.permute.xlu0 0
    %339 = vperm.xlu0 %338, %v102
    %v340 = vpop.permute.xlu0 %339
    %343 = vset.pattern.permute.xlu0 0
    %344 = vperm.xlu0 %343, %v103
    %v345 = vpop.permute.xlu0 %344
    %v347 = vadd.f32 %v333, %v340
    %v348 = vadd.f32 %v334, %v340
    %v349 = vadd.f32 %v335, %v345
    %v350 = vadd.f32 %v336, %v345
    %v355 = vcombine.low %v347, %v348
    %v356 = vcombine.low %v349, %v350
    %359 = vst [vmem:[#allocation6] sm:$0xff] %v355
    %360 = vst [vmem:[#allocation6 + $0x8] sm:$0xff] %v356
    // Predicated region
    $region38: #{tpu_custom_call.1} parent=1 // pred_check
      _
    $region39: #{tpu_custom_call.1} parent=1 // pred_check_branch
      %362 = sbr.rel (0) target = $region41
    $region40: #{tpu_custom_call.1} parent=1 // pred_region
      %s364 = ssub.s32 256, 256
      %365 = vsyncadd [#allocation5], %s364
      %s366 = sshll.u32 [#allocation6], 4
      %s367 = int_to_ptr.vmem [resolvable:$true] %s366
      %372 = dma.vmem_to_hbm [thread:$0]  %s367, 256, %s8, [#allocation5], 128, 128, 8
    $region41: #{tpu_custom_call.1} parent=1 // pred_fallthru
      _
    // Predicated region
    $region42: #{tpu_custom_call.1} parent=1 // pred_check
      _
    $region43: #{tpu_custom_call.1} parent=1 // pred_check_branch
      %374 = sbr.rel (0) target = $region45
    $region44: #{tpu_custom_call.1} parent=1 // pred_region
      %375 = dma.done [#allocation5], 256
    $region45: #{tpu_custom_call.1} parent=1 // pred_fallthru
      _
    %376 = vsyncpa [#allocation4], 1
    %377 = vsyncpa [#allocation5], 1

</llo_original>
